<compile_context>
chip_gen: v5e
topology: v5e:2x2
jax: 0.10.0
libtpu: 0.0.40
codegen_flags: <defaults>
</compile_context>

<pallas_src>
import functools

import jax
import jax.numpy as jnp
from jax import lax
from jax.experimental import pallas as pl
from jax.experimental.pallas import tpu as pltpu


# ----------------------------------------------------------------------------
# Pallas kernel: S_GC_att_edge
# ----------------------------------------------------------------------------
def _make_sgc_kernel(c_out, k_total, compute_dtype):
    def kernel(x_ref, w_ref, b_ref, bd_ref, out_ref):
        # x_ref : (C_in, L)       current (n, t-tile) slab, (t, v) fused into lanes
        # w_ref : (K*C_out, C_in) 1x1-conv weight
        # b_ref : (K*C_out, 1)    bias (f32)
        # bd_ref: (K, L, L)       block-diagonal kron(I_tT, Ahat[n, k])
        # out_ref: (C_out, L)
        y = jnp.dot(w_ref[...], x_ref[...],
                    preferred_element_type=jnp.float32)            # (KC, L) f32
        y = (y + b_ref[...]).astype(compute_dtype)

        # Fused graph mixing: per k, one lane-dense (C_out, L) x (L, L) MXU dot.
        acc = jnp.dot(y[0:c_out, :], bd_ref[0],
                      preferred_element_type=jnp.float32)           # (C_out, L)
        for k in range(1, k_total):
            acc = acc + jnp.dot(y[k * c_out:(k + 1) * c_out, :], bd_ref[k],
                                preferred_element_type=jnp.float32)
        out_ref[...] = acc.astype(out_ref.dtype)

    return kernel


def _choose_t_tile(T, V, target_lanes=128):
    """Pick tT dividing T so the fused (t, v) lane dim is a multiple of 128 and
    small enough that the kron-expanded adjacency stays cheap; fall back to T."""
    if T * V <= target_lanes or (T * V) % 128 != 0:
        return T
    best = T
    for tt in range(1, T + 1):
        if T % tt == 0 and (tt * V) % 128 == 0 and tt * V <= target_lanes:
            best = tt
    return best


@functools.partial(jax.jit, static_argnames=("num_att_edge", "compute_dtype"))
def s_gc_att_edge(x, A_eff, att_edge, W, b, *, num_att_edge,
                  compute_dtype=jnp.bfloat16):
    """x: (N, C_in, T, V) NCHW; A_eff: (K_s, V, V) (already A*M);
    att_edge: (N, K_e, V, V); W: (K*C_out, C_in); b: (K*C_out,).
    Returns (N, C_out, T, V) float32."""
    N, C_in, T, V = x.shape
    K_s = A_eff.shape[0]
    K = K_s + num_att_edge
    KC = W.shape[0]
    C_out = KC // K

    tT = _choose_t_tile(T, V)
    L = tT * V
    nt = T // tT

    # Free (contiguous) reshape: keep NCHW, fuse (T, V) into the lane dim.
    x_flat = x.reshape(N, C_in, T * V).astype(compute_dtype)
    W_c = W.astype(compute_dtype)
    b2 = b.reshape(KC, 1).astype(jnp.float32)

    # Per-sample adjacency stack: fixed graph (A*M) + attention edges.
    Ahat = jnp.concatenate(
        [jnp.broadcast_to(A_eff[None], (N, K_s, V, V)), att_edge],
        axis=1)                                                     # (N, K, V, V)
    # Block-diagonal expansion kron(I_tT, Ahat): turns the per-t (V, V) mixing
    # into one lane-dense (L, L) matmul per k.
    eye = jnp.eye(tT, dtype=Ahat.dtype)
    Bd = jnp.einsum('ab,nkvw->nkavbw', eye, Ahat)
    Bd = Bd.reshape(N, K, L, L).astype(compute_dtype)

    kernel = _make_sgc_kernel(C_out, K, compute_dtype)

    out_flat = pl.pallas_call(
        kernel,
        out_shape=jax.ShapeDtypeStruct((N, C_out, T * V), jnp.float32),
        grid=(N, nt),
        in_specs=[
            pl.BlockSpec((None, C_in, L), lambda n, t: (n, 0, t)),
            pl.BlockSpec((KC, C_in), lambda n, t: (0, 0)),
            pl.BlockSpec((KC, 1), lambda n, t: (0, 0)),
            pl.BlockSpec((None, K, L, L), lambda n, t: (n, 0, 0, 0)),
        ],
        out_specs=pl.BlockSpec((None, C_out, L), lambda n, t: (n, 0, t)),
        compiler_params=pltpu.CompilerParams(
            dimension_semantics=("parallel", "parallel"),
            vmem_limit_bytes=32 * 1024 * 1024,
        ),
    )(x_flat, W_c, b2, Bd)

    return out_flat.reshape(N, C_out, T, V)


def s_gc_att_edge_ref(x, A_eff, att_edge, W, b, *, num_att_edge):
    """Pure-JAX reference matching the PyTorch S_GC_att_edge forward."""
    N, C_in, T, V = x.shape
    K_s = A_eff.shape[0]
    K = K_s + num_att_edge
    C_out = W.shape[0] // K
    y = jnp.einsum('oc,nctv->notv', W, x, precision='highest')
    y = y + b[None, :, None, None]
    y = y.reshape(N, K, C_out, T, V)
    o1 = jnp.einsum('nkctv,kvw->nctw', y[:, :K_s], A_eff, precision='highest')
    o2 = jnp.einsum('nkctv,nkvw->nctw', y[:, K_s:], att_edge, precision='highest')
    return o1 + o2


# ----------------------------------------------------------------------------
# Rest of STGC_Block (plain XLA, inference mode)
# ----------------------------------------------------------------------------
# TODO(synk): BatchNorm2d/Dropout are applied in inference mode (running stats /
# identity) and the tgc temporal conv + residual path run as plain XLA ops, not
# a dedicated Pallas kernel.
def _bn(x, gamma, beta, mean, var, eps=1e-5):
    inv = gamma * lax.rsqrt(var + eps)
    return x * inv[None, :, None, None] + (beta - mean * inv)[None, :, None, None]


def _conv2d(x, w, b, strides, padding):
    y = lax.conv_general_dilated(
        x, w, window_strides=strides, padding=padding,
        dimension_numbers=('NCHW', 'OIHW', 'NCHW'))
    return y + b[None, :, None, None]


def stgc_block_forward(x, A, att_edge, params, *, num_att_edge, stride,
                       t_kernel_size, compute_dtype, use_pallas=True):
    A_eff = A * params["M"]
    if use_pallas:
        h = s_gc_att_edge(x, A_eff, att_edge, params["sgc_w"], params["sgc_b"],
                          num_att_edge=num_att_edge, compute_dtype=compute_dtype)
    else:
        h = s_gc_att_edge_ref(x, A_eff, att_edge, params["sgc_w"],
                              params["sgc_b"], num_att_edge=num_att_edge)
    # tgc: BN -> ReLU -> temporal conv -> BN -> Dropout(eval=identity) -> ReLU
    h = _bn(h, *params["bn1"])
    h = jax.nn.relu(h)
    pad = (t_kernel_size - 1) // 2
    h = _conv2d(h, params["t_w"], params["t_b"], (stride, 1),
                ((pad, pad), (0, 0)))
    h = _bn(h, *params["bn2"])
    h = jax.nn.relu(h)
    # residual
    C_in, C_out = x.shape[1], h.shape[1]
    if C_in == C_out and stride == 1:
        res = x
    else:
        res = _conv2d(x, params["r_w"], params["r_b"], (stride, 1),
                      ((0, 0), (0, 0)))
        res = _bn(res, *params["r_bn"])
    return h + res


# ----------------------------------------------------------------------------
# Demo / self-check
# ----------------------------------------------------------------------------
if __name__ == "__main__":
    N, C_in, C_out, T, V = 2, 4, 8, 16, 16
    s_kernel_size, num_att_edge = 3, 2
    t_kernel_size, stride = 3, 1
    K = s_kernel_size + num_att_edge

    keys = jax.random.split(jax.random.PRNGKey(0), 24)
    x = jax.random.normal(keys[0], (N, C_in, T, V), jnp.float32)
    A = jax.random.normal(keys[1], (s_kernel_size, V, V), jnp.float32) * 0.5
    att_edge = jax.random.normal(keys[2], (N, num_att_edge, V, V),
                                 jnp.float32) * 0.5

    params = {
        "M": 1.0 + 0.3 * jax.random.normal(keys[3], (s_kernel_size, V, V)),
        "sgc_w": jax.random.normal(keys[4], (K * C_out, C_in)) * 0.1,
        "sgc_b": jax.random.normal(keys[5], (K * C_out,)) * 0.1,
        "bn1": (1.0 + 0.1 * jax.random.normal(keys[6], (C_out,)),
                0.1 * jax.random.normal(keys[7], (C_out,)),
                0.1 * jax.random.normal(keys[8], (C_out,)),
                jax.random.uniform(keys[9], (C_out,), minval=0.5, maxval=1.5)),
        "t_w": jax.random.normal(keys[10], (C_out, C_out, t_kernel_size, 1)) * 0.1,
        "t_b": jax.random.normal(keys[11], (C_out,)) * 0.1,
        "bn2": (1.0 + 0.1 * jax.random.normal(keys[12], (C_out,)),
                0.1 * jax.random.normal(keys[13], (C_out,)),
                0.1 * jax.random.normal(keys[14], (C_out,)),
                jax.random.uniform(keys[15], (C_out,), minval=0.5, maxval=1.5)),
        "r_w": jax.random.normal(keys[16], (C_out, C_in, 1, 1)) * 0.1,
        "r_b": jax.random.normal(keys[17], (C_out,)) * 0.1,
        "r_bn": (1.0 + 0.1 * jax.random.normal(keys[18], (C_out,)),
                 0.1 * jax.random.normal(keys[19], (C_out,)),
                 0.1 * jax.random.normal(keys[20], (C_out,)),
                 jax.random.uniform(keys[21], (C_out,), minval=0.5, maxval=1.5)),
    }

    # 1) SGC kernel alone, f32 MXU path vs high-precision reference (tight).
    A_eff = A * params["M"]
    sgc_pl = jax.block_until_ready(
        s_gc_att_edge(x, A_eff, att_edge, params["sgc_w"], params["sgc_b"],
                      num_att_edge=num_att_edge, compute_dtype=jnp.float32))
    sgc_ref = s_gc_att_edge_ref(x, A_eff, att_edge, params["sgc_w"],
                                params["sgc_b"], num_att_edge=num_att_edge)
    assert sgc_pl.shape == (N, C_out, T, V)
    assert jnp.allclose(sgc_pl, sgc_ref, atol=5e-3, rtol=5e-3), \
        "sgc mismatch (f32 path)"

    # 2) Full STGC_Block, bf16 MXU path vs full reference (bf16 tolerance).
    out = jax.block_until_ready(
        stgc_block_forward(x, A, att_edge, params, num_att_edge=num_att_edge,
                           stride=stride, t_kernel_size=t_kernel_size,
                           compute_dtype=jnp.bfloat16, use_pallas=True))
    out_ref = stgc_block_forward(x, A, att_edge, params,
                                 num_att_edge=num_att_edge, stride=stride,
                                 t_kernel_size=t_kernel_size,
                                 compute_dtype=jnp.float32, use_pallas=False)
    assert out.shape == (N, C_out, T, V)
    assert jnp.allclose(out, out_ref, atol=5e-2, rtol=5e-2), \
        "block mismatch (bf16 path)"

    print("KERNEL_OK")
</pallas_src>

<mosaic_0001>
module attributes {stable_mosaic.version = 11 : i64} {
  func.func @kernel(%arg0: i32, %arg1: i32, %arg2: memref<1x4x128xf32, #tpu.memory_space<vmem>>, %arg3: memref<40x4xf32, #tpu.memory_space<vmem>>, %arg4: memref<40x1xf32, #tpu.memory_space<vmem>>, %arg5: memref<1x5x128x128xf32, #tpu.memory_space<vmem>>, %arg6: memref<1x8x128xf32, #tpu.memory_space<vmem>>) attributes {dimension_semantics = [#tpu.dimension_semantics<parallel>, #tpu.dimension_semantics<parallel>], iteration_bounds = array<i64: 2, 2>, scalar_prefetch = 0 : i64, scratch_operands = 0 : i64, tpu.core_type = #tpu.core_type<tc>, window_params = [{transform_indices = @transform_0, window_bounds = array<i64: 1, 4, 128>}, {pipeline_mode = #tpu.pipeline_mode<synchronous>, transform_indices = @transform_1, window_bounds = array<i64: 40, 4>}, {pipeline_mode = #tpu.pipeline_mode<synchronous>, transform_indices = @transform_2, window_bounds = array<i64: 40, 1>}, {transform_indices = @transform_3, window_bounds = array<i64: 1, 5, 128, 128>}, {transform_indices = @transform_4, window_bounds = array<i64: 1, 8, 128>}]} {
    %c0 = arith.constant 0 : index
    %c0_0 = arith.constant 0 : index
    %0 = vector.load %arg3[%c0, %c0_0] : memref<40x4xf32, #tpu.memory_space<vmem>>, vector<40x4xf32>
    %c0_1 = arith.constant 0 : index
    %c0_2 = arith.constant 0 : index
    %c0_3 = arith.constant 0 : index
    %1 = vector.load %arg2[%c0_1, %c0_2, %c0_3] : memref<1x4x128xf32, #tpu.memory_space<vmem>>, vector<1x4x128xf32>
    %2 = vector.shape_cast %1 : vector<1x4x128xf32> to vector<4x128xf32>
    %cst = arith.constant dense<0.000000e+00> : vector<40x128xf32>
    %3 = tpu.matmul %0, %2, %cst {dimension_numbers = #tpu.dot_dimension_numbers<[1], [0], [0], [1], [0, 0, 1, 1], [], []>} : vector<40x4xf32>, vector<4x128xf32>, vector<40x128xf32> -> vector<40x128xf32>
    %c0_4 = arith.constant 0 : index
    %c0_5 = arith.constant 0 : index
    %4 = vector.load %arg4[%c0_4, %c0_5] : memref<40x1xf32, #tpu.memory_space<vmem>>, vector<40x1xf32>
    %5 = vector.broadcast %4 : vector<40x1xf32> to vector<40x128xf32>
    %6 = arith.addf %3, %5 : vector<40x128xf32>
    %7 = vector.extract_strided_slice %6 {offsets = [0, 0], sizes = [8, 128], strides = [1, 1]} : vector<40x128xf32> to vector<8x128xf32>
    %c0_6 = arith.constant 0 : index
    %c0_7 = arith.constant 0 : index
    %c0_8 = arith.constant 0 : index
    %c0_9 = arith.constant 0 : index
    %8 = vector.load %arg5[%c0_6, %c0_7, %c0_8, %c0_9] : memref<1x5x128x128xf32, #tpu.memory_space<vmem>>, vector<1x1x128x128xf32>
    %9 = vector.shape_cast %8 : vector<1x1x128x128xf32> to vector<128x128xf32>
    %cst_10 = arith.constant dense<0.000000e+00> : vector<8x128xf32>
    %10 = tpu.matmul %7, %9, %cst_10 {dimension_numbers = #tpu.dot_dimension_numbers<[1], [0], [0], [1], [0, 0, 1, 1], [], []>} : vector<8x128xf32>, vector<128x128xf32>, vector<8x128xf32> -> vector<8x128xf32>
    %11 = vector.extract_strided_slice %6 {offsets = [8, 0], sizes = [8, 128], strides = [1, 1]} : vector<40x128xf32> to vector<8x128xf32>
    %c0_11 = arith.constant 0 : index
    %c1 = arith.constant 1 : index
    %c0_12 = arith.constant 0 : index
    %c0_13 = arith.constant 0 : index
    %12 = vector.load %arg5[%c0_11, %c1, %c0_12, %c0_13] : memref<1x5x128x128xf32, #tpu.memory_space<vmem>>, vector<1x1x128x128xf32>
    %13 = vector.shape_cast %12 : vector<1x1x128x128xf32> to vector<128x128xf32>
    %cst_14 = arith.constant dense<0.000000e+00> : vector<8x128xf32>
    %14 = tpu.matmul %11, %13, %cst_14 {dimension_numbers = #tpu.dot_dimension_numbers<[1], [0], [0], [1], [0, 0, 1, 1], [], []>} : vector<8x128xf32>, vector<128x128xf32>, vector<8x128xf32> -> vector<8x128xf32>
    %15 = arith.addf %10, %14 : vector<8x128xf32>
    %16 = vector.extract_strided_slice %6 {offsets = [16, 0], sizes = [8, 128], strides = [1, 1]} : vector<40x128xf32> to vector<8x128xf32>
    %c0_15 = arith.constant 0 : index
    %c2 = arith.constant 2 : index
    %c0_16 = arith.constant 0 : index
    %c0_17 = arith.constant 0 : index
    %17 = vector.load %arg5[%c0_15, %c2, %c0_16, %c0_17] : memref<1x5x128x128xf32, #tpu.memory_space<vmem>>, vector<1x1x128x128xf32>
    %18 = vector.shape_cast %17 : vector<1x1x128x128xf32> to vector<128x128xf32>
    %cst_18 = arith.constant dense<0.000000e+00> : vector<8x128xf32>
    %19 = tpu.matmul %16, %18, %cst_18 {dimension_numbers = #tpu.dot_dimension_numbers<[1], [0], [0], [1], [0, 0, 1, 1], [], []>} : vector<8x128xf32>, vector<128x128xf32>, vector<8x128xf32> -> vector<8x128xf32>
    %20 = arith.addf %15, %19 : vector<8x128xf32>
    %21 = vector.extract_strided_slice %6 {offsets = [24, 0], sizes = [8, 128], strides = [1, 1]} : vector<40x128xf32> to vector<8x128xf32>
    %c0_19 = arith.constant 0 : index
    %c3 = arith.constant 3 : index
    %c0_20 = arith.constant 0 : index
    %c0_21 = arith.constant 0 : index
    %22 = vector.load %arg5[%c0_19, %c3, %c0_20, %c0_21] : memref<1x5x128x128xf32, #tpu.memory_space<vmem>>, vector<1x1x128x128xf32>
    %23 = vector.shape_cast %22 : vector<1x1x128x128xf32> to vector<128x128xf32>
    %cst_22 = arith.constant dense<0.000000e+00> : vector<8x128xf32>
    %24 = tpu.matmul %21, %23, %cst_22 {dimension_numbers = #tpu.dot_dimension_numbers<[1], [0], [0], [1], [0, 0, 1, 1], [], []>} : vector<8x128xf32>, vector<128x128xf32>, vector<8x128xf32> -> vector<8x128xf32>
    %25 = arith.addf %20, %24 : vector<8x128xf32>
    %26 = vector.extract_strided_slice %6 {offsets = [32, 0], sizes = [8, 128], strides = [1, 1]} : vector<40x128xf32> to vector<8x128xf32>
    %c0_23 = arith.constant 0 : index
    %c4 = arith.constant 4 : index
    %c0_24 = arith.constant 0 : index
    %c0_25 = arith.constant 0 : index
    %27 = vector.load %arg5[%c0_23, %c4, %c0_24, %c0_25] : memref<1x5x128x128xf32, #tpu.memory_space<vmem>>, vector<1x1x128x128xf32>
    %28 = vector.shape_cast %27 : vector<1x1x128x128xf32> to vector<128x128xf32>
    %cst_26 = arith.constant dense<0.000000e+00> : vector<8x128xf32>
    %29 = tpu.matmul %26, %28, %cst_26 {dimension_numbers = #tpu.dot_dimension_numbers<[1], [0], [0], [1], [0, 0, 1, 1], [], []>} : vector<8x128xf32>, vector<128x128xf32>, vector<8x128xf32> -> vector<8x128xf32>
    %30 = arith.addf %25, %29 : vector<8x128xf32>
    %c0_27 = arith.constant 0 : index
    %c0_28 = arith.constant 0 : index
    %c0_29 = arith.constant 0 : index
    %31 = vector.load %arg6[%c0_27, %c0_28, %c0_29] : memref<1x8x128xf32, #tpu.memory_space<vmem>>, vector<1x8x128xf32>
    %32 = vector.shape_cast %31 : vector<1x8x128xf32> to vector<8x128xf32>
    %33 = vector.shape_cast %30 : vector<8x128xf32> to vector<1x8x128xf32>
    tpu.vector_store %arg6[%c0_27, %c0_28, %c0_29], %33 {strides = array<i32>} : memref<1x8x128xf32, #tpu.memory_space<vmem>>, vector<1x8x128xf32>,
    return
  }
  func.func @transform_0(%arg0: i32, %arg1: i32) -> (i32, i32, i32) {
    %c0_i32 = arith.constant 0 : i32
    %c0_i32_0 = arith.constant 0 : i32
    return %arg0, %c0_i32, %arg1 : i32, i32, i32
  }
  func.func @transform_1(%arg0: i32, %arg1: i32) -> (i32, i32) {
    %c0_i32 = arith.constant 0 : i32
    %c0_i32_0 = arith.constant 0 : i32
    %c0_i32_1 = arith.constant 0 : i32
    return %c0_i32, %c0_i32_0 : i32, i32
  }
  func.func @transform_2(%arg0: i32, %arg1: i32) -> (i32, i32) {
    %c0_i32 = arith.constant 0 : i32
    %c0_i32_0 = arith.constant 0 : i32
    %c0_i32_1 = arith.constant 0 : i32
    return %c0_i32, %c0_i32_0 : i32, i32
  }
  func.func @transform_3(%arg0: i32, %arg1: i32) -> (i32, i32, i32, i32) {
    %c0_i32 = arith.constant 0 : i32
    %c0_i32_0 = arith.constant 0 : i32
    %c0_i32_1 = arith.constant 0 : i32
    %c0_i32_2 = arith.constant 0 : i32
    return %arg0, %c0_i32, %c0_i32_0, %c0_i32_1 : i32, i32, i32, i32
  }
  func.func @transform_4(%arg0: i32, %arg1: i32) -> (i32, i32, i32) {
    %c0_i32 = arith.constant 0 : i32
    %c0_i32_0 = arith.constant 0 : i32
    return %arg0, %c0_i32, %arg1 : i32, i32, i32
  }
}

</mosaic_0001>

<llo_original>
// kernel: s_gc_att_edge.1
$region0: #{s_gc_att_edge.1}
  #allocation0 [shape = 'u32[]', space=smem, size = 0x4, offset = 0x4, fixed_abs, tag = 'smem constant byte address 0x4 - core index']
  #allocation1 [shape = 'u32[72,128]{1,0:T(1,128)}', space=vmem, size = 0x9000, scoped, tag = 'internal scratch']
  %s0 = inlined_call_operand.vmem [shape: f32[2,4,256], index: 0, kind: input, shape index: {}]
  %s1 = inlined_call_operand.vmem [shape: f32[40,4], index: 1, kind: input, shape index: {}]
  %s2 = inlined_call_operand.vmem [shape: f32[40,1], index: 2, kind: input, shape index: {}]
  %s3 = inlined_call_operand.vmem [shape: f32[2,5,128,128], index: 3, kind: input, shape index: {}]
  %s4 = inlined_call_operand.vmem [shape: f32[2,8,256], index: 4, kind: output, shape index: {}]
  %s5 = sld [smem:[#allocation0]]
  $region49: #{s_gc_att_edge.1} parent=0
    _
  %s7 = ssub.s32 1, %s5
  %s8 = scalar_select 0, %s7, %s5
  loop: start=0, step=1, limit=6
  $region2: #{s_gc_att_edge.1} parent=0 // loop_pre_header
    _
  $region3: #{s_gc_att_edge.1} parent=0 // loop_header
    %s10 = sphi 0, %s14
    %p11 = scmp.ge.s32.totalorder %s10, 6
    %s17 = sphi 0, %s29
    %s18 = sphi 0, %s25
    %s19 = sphi 0, %s17
    %s20 = sphi 0, %s18
    %s21 = sphi 0, %s19
    %s22 = sphi 0, %s20
    %s34 = sphi 0, %s36
    %s37 = sphi 0, %s34
    %s38 = sphi 0, %s37
    %s54 = sphi 0, %s38
    %s58 = sphi 0, %s58
    %s60 = sphi 0, %s58
    %s61 = sphi 0, %s60
    %s75 = sphi 0, %s61
    %s79 = sphi 0, %s79
    %s81 = sphi 0, %s79
    %s82 = sphi 0, %s81
    %s96 = sphi 0, %s82
    %s102 = sphi 0, %s104
    %s105 = sphi 0, %s102
    %s106 = sphi 0, %s105
    %s122 = sphi 0, %s106
    %s130 = sphi 0, %s132
    %s133 = sphi 0, %s130
    %s134 = sphi 0, %s133
    %s150 = sphi 0, %s134
  $region4: #{s_gc_att_edge.1} parent=0 // loop_header_branch
    %13 = sbr.rel (%p11) target = $region8
  $region5: #{s_gc_att_edge.1} parent=0 // loop_body
    %s15 = ssub.s32 %s10, 1
    %s16 = ssub.s32 %s10, 2
    %s23 = sadd.s32 1, %s18
    %p24 = scmp.ge.s32.totalorder %s23, 2
    %s25 = scalar_select %p24, 0, %s23
    %s26 = sadd.s32 1, %s17
    %s27 = scalar_select %p24, %s26, %s17
    %p28 = scmp.ge.s32.totalorder %s27, 2
    %s29 = scalar_select %p28, 0, %s27
    %s30 = ssub.s32 %s17, %s29
    %s31 = ssub.s32 %s18, %s25
    %s32 = sor.u32 %s30, %s31
    %p33 = scmp.eq.s32.totalorder %s32, 0
    %s35 = sadd.s32 %s34, 1
    %s36 = scalar_select %p33, %s34, %s35
    %p39 = pneg %p33
    %p40 = scmp.eq.s32.totalorder %s10, 3
    %p41 = por %p39, %p40
    %p42 = scmp.ne.s32.totalorder %s34, %s37
    %p43 = scmp.eq.s32.totalorder %s10, 0
    %p44 = por %p42, %p43
    %p45 = scmp.ne.s32.totalorder %s34, %s37
    %p46 = scmp.eq.s32.totalorder %s15, 3
    %p47 = por %p45, %p46
    %p48 = scmp.ne.s32.totalorder %s37, %s38
    %p49 = scmp.eq.s32.totalorder %s15, 0
    %p50 = por %p48, %p49
    %p51 = scmp.ne.s32.totalorder %s37, %s38
    %p52 = scmp.eq.s32.totalorder %s16, 3
    %p53 = por %p51, %p52
    %p55 = scmp.ne.s32.totalorder %s38, %s54
    %p56 = scmp.eq.s32.totalorder %s16, 0
    %p57 = por %p55, %p56
    %s59 = sadd.s32 %s58, 1
    %p62 = scmp.eq.s32.totalorder %s10, 3
    %p63 = scmp.ne.s32.totalorder %s58, %s60
    %p64 = scmp.eq.s32.totalorder %s10, 0
    %p65 = por %p63, %p64
    %p66 = scmp.ne.s32.totalorder %s58, %s60
    %p67 = scmp.eq.s32.totalorder %s15, 3
    %p68 = por %p66, %p67
    %p69 = scmp.ne.s32.totalorder %s60, %s61
    %p70 = scmp.eq.s32.totalorder %s15, 0
    %p71 = por %p69, %p70
    %p72 = scmp.ne.s32.totalorder %s60, %s61
    %p73 = scmp.eq.s32.totalorder %s16, 3
    %p74 = por %p72, %p73
    %p76 = scmp.ne.s32.totalorder %s61, %s75
    %p77 = scmp.eq.s32.totalorder %s16, 0
    %p78 = por %p76, %p77
    %s80 = sadd.s32 %s79, 1
    %p83 = scmp.eq.s32.totalorder %s10, 3
    %p84 = scmp.ne.s32.totalorder %s79, %s81
    %p85 = scmp.eq.s32.totalorder %s10, 0
    %p86 = por %p84, %p85
    %p87 = scmp.ne.s32.totalorder %s79, %s81
    %p88 = scmp.eq.s32.totalorder %s15, 3
    %p89 = por %p87, %p88
    %p90 = scmp.ne.s32.totalorder %s81, %s82
    %p91 = scmp.eq.s32.totalorder %s15, 0
    %p92 = por %p90, %p91
    %p93 = scmp.ne.s32.totalorder %s81, %s82
    %p94 = scmp.eq.s32.totalorder %s16, 3
    %p95 = por %p93, %p94
    %p97 = scmp.ne.s32.totalorder %s82, %s96
    %p98 = scmp.eq.s32.totalorder %s16, 0
    %p99 = por %p97, %p98
    %s100 = ssub.s32 %s17, %s29
    %p101 = scmp.eq.s32.totalorder %s100, 0
    %s103 = sadd.s32 %s102, 1
    %s104 = scalar_select %p101, %s102, %s103
    %p107 = pneg %p101
    %p108 = scmp.eq.s32.totalorder %s10, 3
    %p109 = por %p107, %p108
    %p110 = scmp.ne.s32.totalorder %s102, %s105
    %p111 = scmp.eq.s32.totalorder %s10, 0
    %p112 = por %p110, %p111
    %p113 = scmp.ne.s32.totalorder %s102, %s105
    %p114 = scmp.eq.s32.totalorder %s15, 3
    %p115 = por %p113, %p114
    %p116 = scmp.ne.s32.totalorder %s105, %s106
    %p117 = scmp.eq.s32.totalorder %s15, 0
    %p118 = por %p116, %p117
    %p119 = scmp.ne.s32.totalorder %s105, %s106
    %p120 = scmp.eq.s32.totalorder %s16, 3
    %p121 = por %p119, %p120
    %p123 = scmp.ne.s32.totalorder %s106, %s122
    %p124 = scmp.eq.s32.totalorder %s16, 0
    %p125 = por %p123, %p124
    %s126 = ssub.s32 %s17, %s29
    %s127 = ssub.s32 %s18, %s25
    %s128 = sor.u32 %s126, %s127
    %p129 = scmp.eq.s32.totalorder %s128, 0
    %s131 = sadd.s32 %s130, 1
    %s132 = scalar_select %p129, %s130, %s131
    %p135 = pneg %p129
    %p136 = scmp.eq.s32.totalorder %s10, 3
    %p137 = por %p135, %p136
    %p138 = scmp.ne.s32.totalorder %s130, %s133
    %p139 = scmp.eq.s32.totalorder %s10, 0
    %p140 = por %p138, %p139
    %p141 = scmp.ne.s32.totalorder %s130, %s133
    %p142 = scmp.eq.s32.totalorder %s15, 3
    %p143 = por %p141, %p142
    %p144 = scmp.ne.s32.totalorder %s133, %s134
    %p145 = scmp.eq.s32.totalorder %s15, 0
    %p146 = por %p144, %p145
    %p147 = scmp.ne.s32.totalorder %s133, %s134
    %p148 = scmp.eq.s32.totalorder %s16, 3
    %p149 = por %p147, %p148
    %p151 = scmp.ne.s32.totalorder %s134, %s150
    %p152 = scmp.eq.s32.totalorder %s16, 0
    %p153 = por %p151, %p152
    %p154 = scmp.le.s32.totalorder 1, %s10
    %p155 = scmp.lt.s32.totalorder %s10, 5
    %p156 = pnand %p154, %p155
    %p157 = pneg %p156
    // Predicated region
    $region9: #{s_gc_att_edge.1} parent=5 // pred_check
      _
    $region10: #{s_gc_att_edge.1} parent=5 // pred_check_branch
      %159 = sbr.rel (%p156) target = $region12
    $region11: #{s_gc_att_edge.1} parent=5 // pred_region
      %s160 = ssub.s32 %s10, 1
      // Predicated region
      $region13: #{s_gc_att_edge.1} parent=11 // pred_check
        %p161 = pneg %p71
      $region14: #{s_gc_att_edge.1} parent=11 // pred_check_branch
        %163 = sbr.rel (%p161) target = $region16
      $region15: #{s_gc_att_edge.1} parent=11 // pred_region
        _
      $region16: #{s_gc_att_edge.1} parent=11 // pred_fallthru
        _
      // Predicated region
      $region17: #{s_gc_att_edge.1} parent=11 // pred_check
        %p164 = pneg %p92
      $region18: #{s_gc_att_edge.1} parent=11 // pred_check_branch
        %166 = sbr.rel (%p164) target = $region20
      $region19: #{s_gc_att_edge.1} parent=11 // pred_region
        _
      $region20: #{s_gc_att_edge.1} parent=11 // pred_fallthru
        _
    $region12: #{s_gc_att_edge.1} parent=5 // pred_fallthru
      _
    %p167 = scmp.lt.s32.totalorder %s10, 4
    // Predicated region
    $region21: #{s_gc_att_edge.1} parent=5 // pred_check
      %p168 = pneg %p167
    $region22: #{s_gc_att_edge.1} parent=5 // pred_check_branch
      %170 = sbr.rel (%p168) target = $region24
    $region23: #{s_gc_att_edge.1} parent=5 // pred_region
      // Predicated region
      $region25: #{s_gc_att_edge.1} parent=23 // pred_check
        %p171 = pneg %p44
      $region26: #{s_gc_att_edge.1} parent=23 // pred_check_branch
        %173 = sbr.rel (%p171) target = $region28
      $region27: #{s_gc_att_edge.1} parent=23 // pred_region
        %p174 = scmp.lt.s32.totalorder %s17, 1
        %s175 = scalar_select %p174, %s17, 1
        %p176 = scmp.lt.s32.totalorder %s18, 1
        %s177 = scalar_select %p176, %s18, 1
        %s178 = smul.addr %s175, 2
        %s179 = sadd.s32 %s177, %s178
        %s180 = smul.addr %s179, 4
        %s181 = scalar_lea.vmem %s0, %s180
      $region28: #{s_gc_att_edge.1} parent=23 // pred_fallthru
        _
      // Predicated region
      $region29: #{s_gc_att_edge.1} parent=23 // pred_check
        %p182 = pneg %p112
      $region30: #{s_gc_att_edge.1} parent=23 // pred_check_branch
        %184 = sbr.rel (%p182) target = $region32
      $region31: #{s_gc_att_edge.1} parent=23 // pred_region
        %p185 = scmp.lt.s32.totalorder %s17, 1
        %s186 = scalar_select %p185, %s17, 1
        %s187 = smul.addr %s186, 80
        %s188 = smul.addr %s187, 8
        %s189 = scalar_lea.vmem %s3, %s188
      $region32: #{s_gc_att_edge.1} parent=23 // pred_fallthru
        _
    $region24: #{s_gc_att_edge.1} parent=5 // pred_fallthru
      _
    %p190 = scmp.le.s32.totalorder 1, %s10
    %p191 = scmp.lt.s32.totalorder %s10, 5
    %p192 = pnand %p190, %p191
    %p193 = pneg %p192
    // Predicated region
    $region33: #{s_gc_att_edge.1} parent=5 // pred_check
      _
    $region34: #{s_gc_att_edge.1} parent=5 // pred_check_branch
      %195 = sbr.rel (%p192) target = $region36
    $region35: #{s_gc_att_edge.1} parent=5 // pred_region
      %s196 = ssub.s32 %s10, 1
      %p197 = scmp.lt.s32.totalorder %s19, 1
      %s198 = scalar_select %p197, %s19, 1
      %p199 = scmp.lt.s32.totalorder %s20, 1
      %s200 = scalar_select %p199, %s20, 1
      %s201 = smul.addr %s198, 2
      %s202 = sadd.s32 %s200, %s201
      %s203 = smul.addr %s202, 4
      %s204 = scalar_lea.vmem %s0, %s203
      %p205 = pneg %p50
      %p206 = pneg %p47
      %p207 = pneg %p71
      %p208 = pneg %p68
      %p209 = pneg %p92
      %p210 = pneg %p89
      %p211 = scmp.lt.s32.totalorder %s19, 1
      %s212 = scalar_select %p211, %s19, 1
      %s213 = smul.addr %s212, 80
      %s214 = smul.addr %s213, 8
      %s215 = scalar_lea.vmem %s3, %s214
      %p216 = pneg %p118
      %p217 = pneg %p115
      %p218 = pneg %p146
      %p219 = pneg %p143
      %p220 = scmp.lt.s32.totalorder %s19, 1
      %s221 = scalar_select %p220, %s19, 1
      %p222 = scmp.lt.s32.totalorder %s20, 1
      %s223 = scalar_select %p222, %s20, 1
      %s224 = smul.addr %s221, 2
      %s225 = sadd.s32 %s223, %s224
      %s226 = smul.addr %s225, 8
      %s227 = scalar_lea.vmem %s4, %s226
      %p228 = scmp.lt.s32.totalorder %s19, 1
      %s229 = scalar_select %p228, %s19, 1
      %p230 = scmp.lt.s32.totalorder %s20, 1
      %s231 = scalar_select %p230, %s20, 1
      %s232 = smul.addr %s229, 2
      %s233 = sadd.s32 %s231, %s232
      %s234 = smul.addr %s233, 4
      %s235 = scalar_lea.vmem %s0, %s234
      %p236 = scmp.lt.s32.totalorder %s19, 1
      %s237 = scalar_select %p236, %s19, 1
      %s238 = smul.addr %s237, 80
      %s239 = smul.addr %s238, 8
      %s240 = scalar_lea.vmem %s3, %s239
      %p241 = scmp.lt.s32.totalorder %s19, 1
      %s242 = scalar_select %p241, %s19, 1
      %p243 = scmp.lt.s32.totalorder %s20, 1
      %s244 = scalar_select %p243, %s20, 1
      %s245 = smul.addr %s242, 2
      %s246 = sadd.s32 %s244, %s245
      %s247 = smul.addr %s246, 8
      %s248 = scalar_lea.vmem %s4, %s247
      %v249 = vld [vmem:[%s1] sm:$0xff]
      %v250 = vld [vmem:[%s1 + $0x8] sm:$0xff]
      %v251 = vld [vmem:[%s1 + $0x10] sm:$0xff]
      %v252 = vld [vmem:[%s1 + $0x18] sm:$0xff]
      %v253 = vld [vmem:[%s1 + $0x20] sm:$0xff]
      %v254 = vld [vmem:[%s235] sm:$0xf]
      %v255 = vld [vmem:[%s2] sm:$0xff]
      %v256 = vld [vmem:[%s2 + $0x8] sm:$0xff]
      %v257 = vld [vmem:[%s2 + $0x10] sm:$0xff]
      %v258 = vld [vmem:[%s2 + $0x18] sm:$0xff]
      %v259 = vld [vmem:[%s2 + $0x20] sm:$0xff]
      %261 = vset.pattern.permute.xlu0 0
      %262 = vperm.xlu0 %261, %v255
      %v263 = vpop.permute.xlu0 %262
      %266 = vset.pattern.permute.xlu0 0
      %267 = vperm.xlu0 %266, %v256
      %v268 = vpop.permute.xlu0 %267
      %271 = vset.pattern.permute.xlu0 0
      %272 = vperm.xlu0 %271, %v257
      %v273 = vpop.permute.xlu0 %272
      %276 = vset.pattern.permute.xlu0 0
      %277 = vperm.xlu0 %276, %v258
      %v278 = vpop.permute.xlu0 %277
      %281 = vset.pattern.permute.xlu0 0
      %282 = vperm.xlu0 %281, %v259
      %v283 = vpop.permute.xlu0 %282
      %vm285 = vcmask 31744
      %v287 = vsel %vm285, %v249, 0
      %v290 = vsel %vm285, %v250, 0
      %v293 = vsel %vm285, %v251, 0
      %v296 = vsel %vm285, %v252, 0
      %v299 = vsel %vm285, %v253, 0
      %vm301 = vcmask 1043456
      %v303 = vsel %vm301, %v254, 0
      %305 = vmatpush.msra.mxu0 0.0
      %306 = vmatpush.msra.mxu0 0.0
      %307 = vmatpush.msra.mxu0 0.0
      %308 = vmatpush.msra.mxu0 0.0
      %309 = vmatpush.msra.mxu0 0.0
      %310 = vmatpush.msra.mxu0 0.0
      %311 = vmatpush.msra.mxu0 0.0
      %312 = vmatpush.msra.mxu0 0.0
      %313 = vmatpush.msra.mxu0 0.0
      %314 = vmatpush.msra.mxu0 0.0
      %315 = vmatpush.msra.mxu0 0.0
      %316 = vmatpush.msra.mxu0 0.0
      %317 = vmatpush.msra.mxu0 0.0
      %318 = vmatpush.msra.mxu0 0.0
      %319 = vmatpush.msra.mxu0 0.0
      %320 = vmatpush.msra.mxu0 %v303
      %321 = vmatmul.f32.gmra.mxu0 %v287
      %v322 = vpop.f32.mrf.mxu0
      %v323 = vadd.f32 %v263, %v322
      %324 = vmatmul.f32.gmra.mxu0 %v290
      %v325 = vpop.f32.mrf.mxu0
      %v326 = vadd.f32 %v268, %v325
      %327 = vmatmul.f32.gmra.mxu0 %v293
      %v328 = vpop.f32.mrf.mxu0
      %v329 = vadd.f32 %v273, %v328
      %330 = vmatmul.f32.gmra.mxu0 %v296
      %v331 = vpop.f32.mrf.mxu0
      %v332 = vadd.f32 %v278, %v331
      %333 = vmatmul.f32.gmra.mxu0 %v299
      %v334 = vpop.f32.mrf.mxu0
      %v335 = vadd.f32 %v283, %v334
      %336 = vdwg.mxu0
      %v337 = vld [vmem:[%s240] sm:$0xff]
      %v338 = vld [vmem:[%s240 + $0x8] sm:$0xff]
      %v339 = vld [vmem:[%s240 + $0x10] sm:$0xff]
      %v340 = vld [vmem:[%s240 + $0x18] sm:$0xff]
      %v341 = vld [vmem:[%s240 + $0x20] sm:$0xff]
      %v342 = vld [vmem:[%s240 + $0x28] sm:$0xff]
      %v343 = vld [vmem:[%s240 + $0x30] sm:$0xff]
      %v344 = vld [vmem:[%s240 + $0x38] sm:$0xff]
      %v345 = vld [vmem:[%s240 + $0x40] sm:$0xff]
      %v346 = vld [vmem:[%s240 + $0x48] sm:$0xff]
      %v347 = vld [vmem:[%s240 + $0x50] sm:$0xff]
      %v348 = vld [vmem:[%s240 + $0x58] sm:$0xff]
      %v349 = vld [vmem:[%s240 + $0x60] sm:$0xff]
      %v350 = vld [vmem:[%s240 + $0x68] sm:$0xff]
      %v351 = vld [vmem:[%s240 + $0x70] sm:$0xff]
      %v352 = vld [vmem:[%s240 + $0x78] sm:$0xff]
      %s353 = scalar_lea.vmem %s240, 128
      %v354 = vld [vmem:[%s353] sm:$0xff]
      %v355 = vld [vmem:[%s353 + $0x8] sm:$0xff]
      %v356 = vld [vmem:[%s353 + $0x10] sm:$0xff]
      %v357 = vld [vmem:[%s353 + $0x18] sm:$0xff]
      %v358 = vld [vmem:[%s353 + $0x20] sm:$0xff]
      %v359 = vld [vmem:[%s353 + $0x28] sm:$0xff]
      %v360 = vld [vmem:[%s353 + $0x30] sm:$0xff]
      %v361 = vld [vmem:[%s353 + $0x38] sm:$0xff]
      %v362 = vld [vmem:[%s353 + $0x40] sm:$0xff]
      %v363 = vld [vmem:[%s353 + $0x48] sm:$0xff]
      %v364 = vld [vmem:[%s353 + $0x50] sm:$0xff]
      %v365 = vld [vmem:[%s353 + $0x58] sm:$0xff]
      %v366 = vld [vmem:[%s353 + $0x60] sm:$0xff]
      %v367 = vld [vmem:[%s353 + $0x68] sm:$0xff]
      %v368 = vld [vmem:[%s353 + $0x70] sm:$0xff]
      %v369 = vld [vmem:[%s353 + $0x78] sm:$0xff]
      %370 = vmatpush.msra.mxu0 %v369
      %371 = vmatpush.msra.mxu0 %v368
      %372 = vmatpush.msra.mxu0 %v367
      %373 = vmatpush.msra.mxu0 %v366
      %374 = vmatpush.msra.mxu0 %v365
      %375 = vmatpush.msra.mxu0 %v364
      %376 = vmatpush.msra.mxu0 %v363
      %377 = vmatpush.msra.mxu0 %v362
      %378 = vmatpush.msra.mxu0 %v361
      %379 = vmatpush.msra.mxu0 %v360
      %380 = vmatpush.msra.mxu0 %v359
      %381 = vmatpush.msra.mxu0 %v358
      %382 = vmatpush.msra.mxu0 %v357
      %383 = vmatpush.msra.mxu0 %v356
      %384 = vmatpush.msra.mxu0 %v355
      %385 = vmatpush.msra.mxu0 %v354
      %386 = vmatmul.f32.gmra.mxu0 %v326
      %v387 = vpop.f32.mrf.mxu0
      %v388 = vadd.f32 0.0, %v387
      %389 = vdwg.mxu0
      %390 = vmatpush.msra.mxu0 %v352
      %391 = vmatpush.msra.mxu0 %v351
      %392 = vmatpush.msra.mxu0 %v350
      %393 = vmatpush.msra.mxu0 %v349
      %394 = vmatpush.msra.mxu0 %v348
      %395 = vmatpush.msra.mxu0 %v347
      %396 = vmatpush.msra.mxu0 %v346
      %397 = vmatpush.msra.mxu0 %v345
      %398 = vmatpush.msra.mxu0 %v344
      %399 = vmatpush.msra.mxu0 %v343
      %400 = vmatpush.msra.mxu0 %v342
      %401 = vmatpush.msra.mxu0 %v341
      %402 = vmatpush.msra.mxu0 %v340
      %403 = vmatpush.msra.mxu0 %v339
      %404 = vmatpush.msra.mxu0 %v338
      %405 = vmatpush.msra.mxu0 %v337
      %406 = vmatmul.f32.gmra.mxu0 %v323
      %v407 = vpop.f32.mrf.mxu0
      %v408 = vadd.f32 %v388, %v407
      %409 = vdwg.mxu0
      %s410 = scalar_lea.vmem %s240, 256
      %v411 = vld [vmem:[%s410] sm:$0xff]
      %v412 = vld [vmem:[%s410 + $0x8] sm:$0xff]
      %v413 = vld [vmem:[%s410 + $0x10] sm:$0xff]
      %v414 = vld [vmem:[%s410 + $0x18] sm:$0xff]
      %v415 = vld [vmem:[%s410 + $0x20] sm:$0xff]
      %v416 = vld [vmem:[%s410 + $0x28] sm:$0xff]
      %v417 = vld [vmem:[%s410 + $0x30] sm:$0xff]
      %v418 = vld [vmem:[%s410 + $0x38] sm:$0xff]
      %v419 = vld [vmem:[%s410 + $0x40] sm:$0xff]
      %v420 = vld [vmem:[%s410 + $0x48] sm:$0xff]
      %v421 = vld [vmem:[%s410 + $0x50] sm:$0xff]
      %v422 = vld [vmem:[%s410 + $0x58] sm:$0xff]
      %v423 = vld [vmem:[%s410 + $0x60] sm:$0xff]
      %v424 = vld [vmem:[%s410 + $0x68] sm:$0xff]
      %v425 = vld [vmem:[%s410 + $0x70] sm:$0xff]
      %v426 = vld [vmem:[%s410 + $0x78] sm:$0xff]
      %427 = vmatpush.msra.mxu0 %v426
      %428 = vmatpush.msra.mxu0 %v425
      %429 = vmatpush.msra.mxu0 %v424
      %430 = vmatpush.msra.mxu0 %v423
      %431 = vmatpush.msra.mxu0 %v422
      %432 = vmatpush.msra.mxu0 %v421
      %433 = vmatpush.msra.mxu0 %v420
      %434 = vmatpush.msra.mxu0 %v419
      %435 = vmatpush.msra.mxu0 %v418
      %436 = vmatpush.msra.mxu0 %v417
      %437 = vmatpush.msra.mxu0 %v416
      %438 = vmatpush.msra.mxu0 %v415
      %439 = vmatpush.msra.mxu0 %v414
      %440 = vmatpush.msra.mxu0 %v413
      %441 = vmatpush.msra.mxu0 %v412
      %442 = vmatpush.msra.mxu0 %v411
      %443 = vmatmul.f32.gmra.mxu0 %v329
      %v444 = vpop.f32.mrf.mxu0
      %v445 = vadd.f32 0.0, %v444
      %446 = vdwg.mxu0
      %v447 = vadd.f32 %v408, %v445
      %s448 = scalar_lea.vmem %s240, 384
      %v449 = vld [vmem:[%s448] sm:$0xff]
      %v450 = vld [vmem:[%s448 + $0x8] sm:$0xff]
      %v451 = vld [vmem:[%s448 + $0x10] sm:$0xff]
      %v452 = vld [vmem:[%s448 + $0x18] sm:$0xff]
      %v453 = vld [vmem:[%s448 + $0x20] sm:$0xff]
      %v454 = vld [vmem:[%s448 + $0x28] sm:$0xff]
      %v455 = vld [vmem:[%s448 + $0x30] sm:$0xff]
      %v456 = vld [vmem:[%s448 + $0x38] sm:$0xff]
      %v457 = vld [vmem:[%s448 + $0x40] sm:$0xff]
      %v458 = vld [vmem:[%s448 + $0x48] sm:$0xff]
      %v459 = vld [vmem:[%s448 + $0x50] sm:$0xff]
      %v460 = vld [vmem:[%s448 + $0x58] sm:$0xff]
      %v461 = vld [vmem:[%s448 + $0x60] sm:$0xff]
      %v462 = vld [vmem:[%s448 + $0x68] sm:$0xff]
      %v463 = vld [vmem:[%s448 + $0x70] sm:$0xff]
      %v464 = vld [vmem:[%s448 + $0x78] sm:$0xff]
      %465 = vmatpush.msra.mxu0 %v464
      %466 = vmatpush.msra.mxu0 %v463
      %467 = vmatpush.msra.mxu0 %v462
      %468 = vmatpush.msra.mxu0 %v461
      %469 = vmatpush.msra.mxu0 %v460
      %470 = vmatpush.msra.mxu0 %v459
      %471 = vmatpush.msra.mxu0 %v458
      %472 = vmatpush.msra.mxu0 %v457
      %473 = vmatpush.msra.mxu0 %v456
      %474 = vmatpush.msra.mxu0 %v455
      %475 = vmatpush.msra.mxu0 %v454
      %476 = vmatpush.msra.mxu0 %v453
      %477 = vmatpush.msra.mxu0 %v452
      %478 = vmatpush.msra.mxu0 %v451
      %479 = vmatpush.msra.mxu0 %v450
      %480 = vmatpush.msra.mxu0 %v449
      %481 = vmatmul.f32.gmra.mxu0 %v332
      %v482 = vpop.f32.mrf.mxu0
      %v483 = vadd.f32 0.0, %v482
      %484 = vdwg.mxu0
      %v485 = vadd.f32 %v447, %v483
      %s486 = scalar_lea.vmem %s240, 512
      %v487 = vld [vmem:[%s486] sm:$0xff]
      %v488 = vld [vmem:[%s486 + $0x8] sm:$0xff]
      %v489 = vld [vmem:[%s486 + $0x10] sm:$0xff]
      %v490 = vld [vmem:[%s486 + $0x18] sm:$0xff]
      %v491 = vld [vmem:[%s486 + $0x20] sm:$0xff]
      %v492 = vld [vmem:[%s486 + $0x28] sm:$0xff]
      %v493 = vld [vmem:[%s486 + $0x30] sm:$0xff]
      %v494 = vld [vmem:[%s486 + $0x38] sm:$0xff]
      %v495 = vld [vmem:[%s486 + $0x40] sm:$0xff]
      %v496 = vld [vmem:[%s486 + $0x48] sm:$0xff]
      %v497 = vld [vmem:[%s486 + $0x50] sm:$0xff]
      %v498 = vld [vmem:[%s486 + $0x58] sm:$0xff]
      %v499 = vld [vmem:[%s486 + $0x60] sm:$0xff]
      %v500 = vld [vmem:[%s486 + $0x68] sm:$0xff]
      %v501 = vld [vmem:[%s486 + $0x70] sm:$0xff]
      %v502 = vld [vmem:[%s486 + $0x78] sm:$0xff]
      %503 = vmatpush.msra.mxu0 %v502
      %504 = vmatpush.msra.mxu0 %v501
      %505 = vmatpush.msra.mxu0 %v500
      %506 = vmatpush.msra.mxu0 %v499
      %507 = vmatpush.msra.mxu0 %v498
      %508 = vmatpush.msra.mxu0 %v497
      %509 = vmatpush.msra.mxu0 %v496
      %510 = vmatpush.msra.mxu0 %v495
      %511 = vmatpush.msra.mxu0 %v494
      %512 = vmatpush.msra.mxu0 %v493
      %513 = vmatpush.msra.mxu0 %v492
      %514 = vmatpush.msra.mxu0 %v491
      %515 = vmatpush.msra.mxu0 %v490
      %516 = vmatpush.msra.mxu0 %v489
      %517 = vmatpush.msra.mxu0 %v488
      %518 = vmatpush.msra.mxu0 %v487
      %519 = vmatmul.f32.gmra.mxu0 %v335
      %v520 = vpop.f32.mrf.mxu0
      %v521 = vadd.f32 0.0, %v520
      %522 = vdwg.mxu0
      %v523 = vadd.f32 %v485, %v521
      %524 = vst [vmem:[%s248] sm:$0xff] %v523
      %p525 = scmp.lt.s32.totalorder %s19, 1
      %s526 = scalar_select %p525, %s19, 1
      %p527 = scmp.lt.s32.totalorder %s20, 1
      %s528 = scalar_select %p527, %s20, 1
      %s529 = smul.addr %s526, 2
      %s530 = sadd.s32 %s528, %s529
      %s531 = smul.addr %s530, 8
      %s532 = scalar_lea.vmem %s4, %s531
      // Predicated region
      $region37: #{s_gc_att_edge.1} parent=35 // pred_check
        %p533 = pneg %p143
      $region38: #{s_gc_att_edge.1} parent=35 // pred_check_branch
        %535 = sbr.rel (%p533) target = $region40
      $region39: #{s_gc_att_edge.1} parent=35 // pred_region
        _
      $region40: #{s_gc_att_edge.1} parent=35 // pred_fallthru
        _
    $region36: #{s_gc_att_edge.1} parent=5 // pred_fallthru
      _
    %p536 = scmp.le.s32.totalorder 2, %s10
    // Predicated region
    $region41: #{s_gc_att_edge.1} parent=5 // pred_check
      %p537 = pneg %p536
    $region42: #{s_gc_att_edge.1} parent=5 // pred_check_branch
      %539 = sbr.rel (%p537) target = $region44
    $region43: #{s_gc_att_edge.1} parent=5 // pred_region
      %s540 = ssub.s32 %s10, 2
      // Predicated region
      $region45: #{s_gc_att_edge.1} parent=43 // pred_check
        %p541 = pneg %p149
      $region46: #{s_gc_att_edge.1} parent=43 // pred_check_branch
        %543 = sbr.rel (%p541) target = $region48
      $region47: #{s_gc_att_edge.1} parent=43 // pred_region
        %p544 = scmp.lt.s32.totalorder %s21, 1
        %s545 = scalar_select %p544, %s21, 1
        %p546 = scmp.lt.s32.totalorder %s22, 1
        %s547 = scalar_select %p546, %s22, 1
        %s548 = smul.addr %s545, 2
        %s549 = sadd.s32 %s547, %s548
        %s550 = smul.addr %s549, 8
        %s551 = scalar_lea.vmem %s4, %s550
      $region48: #{s_gc_att_edge.1} parent=43 // pred_fallthru
        _
    $region44: #{s_gc_att_edge.1} parent=5 // pred_fallthru
      _
  $region6: #{s_gc_att_edge.1} parent=0 // loop_footer
    %s14 = sadd.s32 1, %s10
  $region7: #{s_gc_att_edge.1} parent=0 // loop_footer_branch
    %9 = sbr.rel target = $region3
  $region8: #{s_gc_att_edge.1} parent=0 // loop_exit
    _

</llo_original>
